<compile_context>
chip_gen: v6e
topology: v6e:2x2x1
jax: 0.10.0
libtpu: 0.0.40
codegen_flags: <defaults>
</compile_context>

<pallas_src>
import functools

import numpy as np
import jax
import jax.numpy as jnp
from jax import lax
from jax.experimental import pallas as pl
from jax.experimental.pallas import tpu as pltpu

BN_EPS = 1e-5
_TILE_BYTES_TARGET = 1 << 20         # aim for ~1 MiB of activation rows per step
_VMEM_BUDGET = 20 * 1024 * 1024      # keep double-buffered tiles under this
_VMEM_LIMIT = 48 * 1024 * 1024       # scoped VMEM cap (v7x-safe; raise on v5e/v6e)


def _round_up(x, m):
    return ((x + m - 1) // m) * m


# --------------------------------------------------------------------------- #
# Kernels
# --------------------------------------------------------------------------- #
def _conv_stats_kernel(x_ref, w_ref, y_ref, stat_ref, *, keff_h, Hb, Ho,
                       mask_rows):
    """Pass 1: fused-row conv tile + per-tile sum / sum-of-squares.

    x_ref:   (rows_in, Ws_use*Ctot)   lane-dense fused input window (bf16)
    w_ref:   (keff_h, Ws_use*Ctot, Wo*Cout) fused row weights
    y_ref:   (Hb, Wo*Cout)            lane-dense conv output tile
    stat_ref:(2, Wo*Cout)             [col-sums; col-sums-of-squares] (f32)
    """
    acc = jnp.zeros(y_ref.shape, jnp.float32)
    for di in range(keff_h):                    # static, fully unrolled (<= 3)
        acc = acc + jnp.dot(x_ref[di:di + Hb, :], w_ref[di],
                            preferred_element_type=jnp.float32)
    y_ref[...] = acc.astype(y_ref.dtype)

    if mask_rows:
        # Ragged last row-block: rows >= Ho must not pollute the batch stats.
        rb = pl.program_id(1)
        rv = jnp.minimum(Hb, Ho - rb * Hb)
        row = lax.broadcasted_iota(jnp.int32, (Hb, 1), 0)
        acc = jnp.where(row < rv, acc, 0.0)
    stat_ref[0:1, :] = jnp.sum(acc, axis=0, keepdims=True)
    stat_ref[1:2, :] = jnp.sum(acc * acc, axis=0, keepdims=True)


def _bn_relu_kernel(y_ref, scale_ref, shift_ref, o_ref):
    """Pass 2: pure elementwise folded-BN scale/shift + ReLU (lane-dense)."""
    y = y_ref[...].astype(jnp.float32)
    o_ref[...] = jnp.maximum(y * scale_ref[...] + shift_ref[...],
                             0.0).astype(o_ref.dtype)


# --------------------------------------------------------------------------- #
# Fused row-weight construction (static index scatter, traced gather)
# --------------------------------------------------------------------------- #
def _build_fused_weights(w_oihw, *, s, Wo, Ws_use, Cin, Ctot, keff_h, dtype):
    """W_big[di, (q+dj)*Ctot + ph*Cin + c, q*Cout + o] = w[o, c, i, j]."""
    Cout, _, kh, kw = w_oihw.shape
    Kf = Ws_use * Ctot
    Nf = Wo * Cout
    size = kh * kw * Cin * Cout
    idx = np.full((keff_h, Kf, Nf), size, np.int32)      # `size` -> appended 0
    co_block = (np.arange(Cin)[:, None] * Cout +
                np.arange(Cout)[None, :]).astype(np.int32)
    for i in range(kh):
        for j in range(kw):
            di, dj = i // s, j // s
            ph = (i % s) * s + (j % s)
            tap_base = (i * kw + j) * Cin * Cout
            for q in range(Wo):
                k0 = (q + dj) * Ctot + ph * Cin
                idx[di, k0:k0 + Cin, q * Cout:(q + 1) * Cout] = \
                    tap_base + co_block
    # weights flattened in (tap, cin, cout) order, plus a trailing zero
    w_flat = jnp.transpose(w_oihw, (2, 3, 1, 0)).reshape(-1).astype(jnp.float32)
    w_flat = jnp.concatenate([w_flat, jnp.zeros((1,), jnp.float32)])
    return w_flat[jnp.asarray(idx)].astype(dtype)         # (keff_h, Kf, Nf)


# --------------------------------------------------------------------------- #
# Wrapper (NHWC core + NCHW shim)
# --------------------------------------------------------------------------- #
def conv_block_forward_nhwc(x_nhwc, w_oihw, bias, gamma, beta, *,
                            stride=1, padding=0, row_block=None,
                            matmul_dtype=jnp.bfloat16, out_dtype=jnp.float32):
    """relu(batchnorm(conv2d(x))) with training-mode (batch-stat) BN, NHWC io.

    `bias` is accepted for API fidelity but unused: training-mode BN's mean
    subtraction cancels a per-channel conv bias exactly.  bf16 operands by
    default (f32 accumulation / stats / BN math); pass matmul_dtype=jnp.float32
    for bit-faithful f32 numerics.
    """
    del bias
    N, H, W, Cin = x_nhwc.shape
    Cout, Cin_w, kh, kw = w_oihw.shape
    assert Cin == Cin_w
    s, p = int(stride), int(padding)

    Ho = (H + 2 * p - kh) // s + 1
    Wo = (W + 2 * p - kw) // s + 1
    M = N * Ho * Wo
    itemsize = jnp.dtype(matmul_dtype).itemsize

    # ---- layout prep: pad, (stride>1) space-to-depth, fuse (W, C) on lanes --
    x = x_nhwc.astype(matmul_dtype)
    if p:
        x = jnp.pad(x, ((0, 0), (p, p), (p, p), (0, 0)))
    Hp, Wp = H + 2 * p, W + 2 * p

    if s > 1:
        Hp2, Wp2 = _round_up(Hp, s), _round_up(Wp, s)
        if (Hp2, Wp2) != (Hp, Wp):
            x = jnp.pad(x, ((0, 0), (0, Hp2 - Hp), (0, Wp2 - Wp), (0, 0)))
        Hs, Ws = Hp2 // s, Wp2 // s
        x = x.reshape(N, Hs, s, Ws, s, Cin)
        x = jnp.transpose(x, (0, 1, 3, 2, 4, 5)).reshape(N, Hs, Ws, s * s * Cin)
        Ctot = s * s * Cin
    else:
        Hs, Ws, Ctot = Hp, Wp, Cin

    keff_h = (kh - 1) // s + 1          # distinct row taps after space-to-depth
    keff_w = (kw - 1) // s + 1
    Ws_use = Wo + keff_w - 1            # <= Ws by construction
    Kf = Ws_use * Ctot                  # fused (lane-dense) contraction dim
    Nf = Wo * Cout                      # fused (lane-dense) output dim

    x = x[:, :, :Ws_use, :].reshape(N, Hs, Kf)

    # ---- choose the output-row tile (M tiling) under a VMEM budget ----------
    if row_block is not None:
        Hb = int(row_block)
    else:
        Hb = _TILE_BYTES_TARGET // max(1, (Kf + Nf) * itemsize)
    Hb = int(max(1, min(Hb, Ho)))

    def _tile_bytes(hb):                # padded, double-buffered estimate
        sub = 16 if itemsize == 2 else 8
        in_b = _round_up(hb + keff_h - 1, sub) * _round_up(Kf, 128) * itemsize
        y_b = _round_up(hb, sub) * _round_up(Nf, 128) * itemsize
        o_b = _round_up(hb, 8) * _round_up(Nf, 128) * 4
        w_b = keff_h * _round_up(Kf, sub) * _round_up(Nf, 128) * itemsize
        st_b = 8 * _round_up(Nf, 128) * 4
        return 2 * (in_b + y_b + o_b + w_b + st_b)

    while Hb > 8 and _tile_bytes(Hb) > _VMEM_BUDGET:
        Hb = max(8, Hb // 2)
    Hb = min(Hb, Ho)

    nrb = -(-Ho // Hb)
    Ho_pad = nrb * Hb
    rows_in = Hb + keff_h - 1

    # Pad rows so every block's haloed window is in range (extra rows are 0).
    Hneed = Ho_pad + keff_h - 1
    if Hneed > Hs:
        x = jnp.pad(x, ((0, 0), (0, Hneed - Hs), (0, 0)))

    # Per-block haloed row windows (~(1 + halo/Hb)x copy of x, bf16).
    # TODO(synk): replace with pl.ANY + manual overlapping-row DMA.
    row_idx = (np.arange(nrb)[:, None] * Hb +
               np.arange(rows_in)[None, :]).reshape(-1)
    x_blk = jnp.take(x, jnp.asarray(row_idx, dtype=jnp.int32), axis=1)
    x_blk = x_blk.reshape(N, nrb, rows_in, Kf)

    w_big = _build_fused_weights(w_oihw, s=s, Wo=Wo, Ws_use=Ws_use, Cin=Cin,
                                 Ctot=Ctot, keff_h=keff_h, dtype=matmul_dtype)

    cparams = pltpu.CompilerParams(
        dimension_semantics=("parallel", "parallel"),
        vmem_limit_bytes=_VMEM_LIMIT)

    x_spec = pl.BlockSpec((None, None, rows_in, Kf), lambda n, rb: (n, rb, 0, 0))
    w_spec = pl.BlockSpec((keff_h, Kf, Nf), lambda n, rb: (0, 0, 0))
    y_spec = pl.BlockSpec((None, None, Hb, Nf), lambda n, rb: (n, rb, 0, 0))
    stat_spec = pl.BlockSpec((None, None, 2, Nf), lambda n, rb: (n, rb, 0, 0))
    row_spec = pl.BlockSpec((1, Nf), lambda n, rb: (0, 0))

    conv_dtype = matmul_dtype

    # ---- pass 1: streamed conv (stored, no recompute) + lane-dense stats ----
    y_conv, stats = pl.pallas_call(
        functools.partial(_conv_stats_kernel, keff_h=keff_h, Hb=Hb, Ho=Ho,
                          mask_rows=bool(Ho % Hb)),
        out_shape=(jax.ShapeDtypeStruct((N, nrb, Hb, Nf), conv_dtype),
                   jax.ShapeDtypeStruct((N, nrb, 2, Nf), jnp.float32)),
        grid=(N, nrb),
        in_specs=[x_spec, w_spec],
        out_specs=(y_spec, stat_spec),
        compiler_params=cparams,
    )(x_blk, w_big)

    # Tiny cross-tile combine + folded scale/shift (biased variance, eps=1e-5).
    # Note: E[x^2]-E[x]^2 in f32; fine at these magnitudes (see review notes).
    ssum = jnp.sum(stats[:, :, 0, :], axis=(0, 1)).reshape(Wo, Cout).sum(axis=0)
    ssq = jnp.sum(stats[:, :, 1, :], axis=(0, 1)).reshape(Wo, Cout).sum(axis=0)
    mean = ssum / M
    var = jnp.maximum(ssq / M - mean * mean, 0.0)
    inv_std = lax.rsqrt(var + BN_EPS)
    scale_v = gamma.astype(jnp.float32) * inv_std
    shift_v = beta.astype(jnp.float32) - mean * scale_v
    scale_row = jnp.broadcast_to(scale_v[None, :], (Wo, Cout)).reshape(1, Nf)
    shift_row = jnp.broadcast_to(shift_v[None, :], (Wo, Cout)).reshape(1, Nf)

    # ---- pass 2: elementwise scale/shift + ReLU over the stored conv tiles --
    y_bn = pl.pallas_call(
        _bn_relu_kernel,
        out_shape=jax.ShapeDtypeStruct((N, nrb, Hb, Nf), out_dtype),
        grid=(N, nrb),
        in_specs=[y_spec, row_spec, row_spec],
        out_specs=y_spec,
        compiler_params=cparams,
    )(y_conv, scale_row, shift_row)

    y = y_bn.reshape(N, Ho_pad, Nf)[:, :Ho, :]           # drop ragged pad rows
    return y.reshape(N, Ho, Wo, Cout)                    # NHWC


def conv_block_forward(x_nchw, w_oihw, bias, gamma, beta, *,
                       stride=1, padding=0, row_block=None,
                       matmul_dtype=jnp.bfloat16, out_dtype=jnp.float32):
    """NCHW shim over the NHWC core (chained ConvBlocks should use the core)."""
    x = jnp.transpose(x_nchw, (0, 2, 3, 1))
    y = conv_block_forward_nhwc(x, w_oihw, bias, gamma, beta,
                                stride=stride, padding=padding,
                                row_block=row_block, matmul_dtype=matmul_dtype,
                                out_dtype=out_dtype)
    return jnp.transpose(y, (0, 3, 1, 2))


# --------------------------------------------------------------------------- #
# Pure-JAX reference (mirrors the PyTorch ConvBlock, training-mode BN)
# --------------------------------------------------------------------------- #
def _reference(x_nchw, w_oihw, bias, gamma, beta, *, stride=1, padding=0):
    y = lax.conv_general_dilated(
        x_nchw.astype(jnp.float32), w_oihw.astype(jnp.float32),
        window_strides=(stride, stride),
        padding=[(padding, padding), (padding, padding)],
        dimension_numbers=("NCHW", "OIHW", "NCHW"))
    y = y + bias[None, :, None, None]
    mean = jnp.mean(y, axis=(0, 2, 3), keepdims=True)
    var = jnp.mean((y - mean) ** 2, axis=(0, 2, 3), keepdims=True)   # biased
    y = (y - mean) * lax.rsqrt(var + BN_EPS)
    y = y * gamma[None, :, None, None] + beta[None, :, None, None]
    return jnp.maximum(y, 0.0)


if __name__ == "__main__":
    key = jax.random.PRNGKey(0)
    kx, k1, k2, k3 = jax.random.split(key, 4)

    N, Cin, H, W = 2, 4, 16, 16
    x = jax.random.normal(kx, (N, Cin, H, W), dtype=jnp.float32)

    def make_params(k, cin, cout, ksize):
        kw_, kb_, kg_, kbe_ = jax.random.split(k, 4)
        w = jax.random.normal(kw_, (cout, cin, ksize, ksize), jnp.float32) * 0.1
        b = jax.random.normal(kb_, (cout,), jnp.float32) * 0.05
        g = 1.0 + 0.1 * jax.random.normal(kg_, (cout,), jnp.float32)
        be = 0.1 * jax.random.normal(kbe_, (cout,), jnp.float32)
        return w, b, g, be

    # Three ConvBlock configs mirroring the module: 3x3/s1/p1 (conv0s, spatial
    # decoders), 3x3/s2/p1 (conv1s / decoder_top, ragged row-tiling exercised),
    # 1x1/s1/p0 (conv2s / decoder_top pointwise convs).
    configs = [
        dict(cout=8, k=3, stride=1, padding=1, row_block=4),   # 4 row blocks
        dict(cout=4, k=3, stride=2, padding=1, row_block=3),   # ragged (Ho=8)
        dict(cout=8, k=1, stride=1, padding=0, row_block=None),
    ]
    pkeys = [k1, k2, k3]

    for cfg, pk in zip(configs, pkeys):
        w, b, g, be = make_params(pk, Cin, cfg["cout"], cfg["k"])
        ref = _reference(x, w, b, g, be,
                         stride=cfg["stride"], padding=cfg["padding"])

        # Default bf16-operand path (f32 accumulation/stats): loose tolerance,
        # since bf16 rounding of the conv output is amplified by 1/std in BN.
        fwd = jax.jit(functools.partial(
            conv_block_forward, stride=cfg["stride"], padding=cfg["padding"],
            row_block=cfg["row_block"]))
        out = jax.block_until_ready(fwd(x, w, b, g, be))
        assert out.shape == ref.shape, (cfg, out.shape, ref.shape)
        max_err = float(jnp.max(jnp.abs(out - ref)))
        mean_err = float(jnp.mean(jnp.abs(out - ref)))
        assert max_err < 1e-1, (cfg, "bf16 max", max_err)
        assert mean_err < 1e-2, (cfg, "bf16 mean", mean_err)

        # f32-operand path: demonstrates the kernel math is (near-)exact.
        fwd32 = jax.jit(functools.partial(
            conv_block_forward, stride=cfg["stride"], padding=cfg["padding"],
            row_block=cfg["row_block"], matmul_dtype=jnp.float32))
        out32 = jax.block_until_ready(fwd32(x, w, b, g, be))
        err32 = float(jnp.max(jnp.abs(out32 - ref)))
        assert err32 < 2e-4, (cfg, "f32", err32)

    print("KERNEL_OK")
</pallas_src>

<mosaic_0001>
module attributes {stable_mosaic.version = 11 : i64} {
  func.func @_conv_stats_kernel(%arg0: i32, %arg1: i32, %arg2: memref<1x1x6x72xbf16, #tpu.memory_space<vmem>>, %arg3: memref<3x72x128xbf16, #tpu.memory_space<vmem>>, %arg4: memref<1x1x4x128xbf16, #tpu.memory_space<vmem>>, %arg5: memref<1x1x2x128xf32, #tpu.memory_space<vmem>>) attributes {dimension_semantics = [#tpu.dimension_semantics<parallel>, #tpu.dimension_semantics<parallel>], iteration_bounds = array<i64: 2, 4>, scalar_prefetch = 0 : i64, scratch_operands = 0 : i64, tpu.core_type = #tpu.core_type<tc>, window_params = [{transform_indices = @transform_0, window_bounds = array<i64: 1, 1, 6, 72>}, {pipeline_mode = #tpu.pipeline_mode<synchronous>, transform_indices = @transform_1, window_bounds = array<i64: 3, 72, 128>}, {transform_indices = @transform_2, window_bounds = array<i64: 1, 1, 4, 128>}, {transform_indices = @transform_3, window_bounds = array<i64: 1, 1, 2, 128>}]} {
    %cst = arith.constant 0.000000e+00 : f32
    %0 = vector.broadcast %cst : f32 to vector<4x128xf32>
    %c0 = arith.constant 0 : index
    %c0_0 = arith.constant 0 : index
    %c0_1 = arith.constant 0 : index
    %c0_2 = arith.constant 0 : index
    %1 = vector.load %arg2[%c0, %c0_0, %c0_1, %c0_2] : memref<1x1x6x72xbf16, #tpu.memory_space<vmem>>, vector<1x1x4x72xbf16>
    %2 = vector.shape_cast %1 : vector<1x1x4x72xbf16> to vector<4x72xbf16>
    %c0_3 = arith.constant 0 : index
    %c0_4 = arith.constant 0 : index
    %c0_5 = arith.constant 0 : index
    %3 = vector.load %arg3[%c0_3, %c0_4, %c0_5] : memref<3x72x128xbf16, #tpu.memory_space<vmem>>, vector<1x72x128xbf16>
    %4 = vector.shape_cast %3 : vector<1x72x128xbf16> to vector<72x128xbf16>
    %cst_6 = arith.constant dense<0.000000e+00> : vector<4x128xf32>
    %5 = tpu.matmul %2, %4, %cst_6 {dimension_numbers = #tpu.dot_dimension_numbers<[1], [0], [0], [1], [0, 0, 1, 1], [], []>} : vector<4x72xbf16>, vector<72x128xbf16>, vector<4x128xf32> -> vector<4x128xf32>
    %6 = arith.addf %0, %5 : vector<4x128xf32>
    %c0_7 = arith.constant 0 : index
    %c0_8 = arith.constant 0 : index
    %c1 = arith.constant 1 : index
    %c0_9 = arith.constant 0 : index
    %7 = vector.load %arg2[%c0_7, %c0_8, %c1, %c0_9] : memref<1x1x6x72xbf16, #tpu.memory_space<vmem>>, vector<1x1x4x72xbf16>
    %8 = vector.shape_cast %7 : vector<1x1x4x72xbf16> to vector<4x72xbf16>
    %c1_10 = arith.constant 1 : index
    %c0_11 = arith.constant 0 : index
    %c0_12 = arith.constant 0 : index
    %9 = vector.load %arg3[%c1_10, %c0_11, %c0_12] : memref<3x72x128xbf16, #tpu.memory_space<vmem>>, vector<1x72x128xbf16>
    %10 = vector.shape_cast %9 : vector<1x72x128xbf16> to vector<72x128xbf16>
    %cst_13 = arith.constant dense<0.000000e+00> : vector<4x128xf32>
    %11 = tpu.matmul %8, %10, %cst_13 {dimension_numbers = #tpu.dot_dimension_numbers<[1], [0], [0], [1], [0, 0, 1, 1], [], []>} : vector<4x72xbf16>, vector<72x128xbf16>, vector<4x128xf32> -> vector<4x128xf32>
    %12 = arith.addf %6, %11 : vector<4x128xf32>
    %c0_14 = arith.constant 0 : index
    %c0_15 = arith.constant 0 : index
    %c2 = arith.constant 2 : index
    %c0_16 = arith.constant 0 : index
    %13 = vector.load %arg2[%c0_14, %c0_15, %c2, %c0_16] : memref<1x1x6x72xbf16, #tpu.memory_space<vmem>>, vector<1x1x4x72xbf16>
    %14 = vector.shape_cast %13 : vector<1x1x4x72xbf16> to vector<4x72xbf16>
    %c2_17 = arith.constant 2 : index
    %c0_18 = arith.constant 0 : index
    %c0_19 = arith.constant 0 : index
    %15 = vector.load %arg3[%c2_17, %c0_18, %c0_19] : memref<3x72x128xbf16, #tpu.memory_space<vmem>>, vector<1x72x128xbf16>
    %16 = vector.shape_cast %15 : vector<1x72x128xbf16> to vector<72x128xbf16>
    %cst_20 = arith.constant dense<0.000000e+00> : vector<4x128xf32>
    %17 = tpu.matmul %14, %16, %cst_20 {dimension_numbers = #tpu.dot_dimension_numbers<[1], [0], [0], [1], [0, 0, 1, 1], [], []>} : vector<4x72xbf16>, vector<72x128xbf16>, vector<4x128xf32> -> vector<4x128xf32>
    %18 = arith.addf %12, %17 : vector<4x128xf32>
    %19 = arith.truncf %18 : vector<4x128xf32> to vector<4x128xbf16>
    %c0_21 = arith.constant 0 : index
    %c0_22 = arith.constant 0 : index
    %c0_23 = arith.constant 0 : index
    %c0_24 = arith.constant 0 : index
    %20 = vector.load %arg4[%c0_21, %c0_22, %c0_23, %c0_24] : memref<1x1x4x128xbf16, #tpu.memory_space<vmem>>, vector<1x1x4x128xbf16>
    %21 = vector.shape_cast %20 : vector<1x1x4x128xbf16> to vector<4x128xbf16>
    %22 = vector.shape_cast %19 : vector<4x128xbf16> to vector<1x1x4x128xbf16>
    tpu.vector_store %arg4[%c0_21, %c0_22, %c0_23, %c0_24], %22 {strides = array<i32>} : memref<1x1x4x128xbf16, #tpu.memory_space<vmem>>, vector<1x1x4x128xbf16>,
    %cst_25 = arith.constant dense<0.000000e+00> : vector<128xf32>
    %23 = vector.multi_reduction <add>, %18, %cst_25 [0] : vector<4x128xf32> to vector<128xf32>
    %24 = vector.shape_cast %23 : vector<128xf32> to vector<1x128xf32>
    %c0_26 = arith.constant 0 : index
    %c0_27 = arith.constant 0 : index
    %c0_28 = arith.constant 0 : index
    %c0_29 = arith.constant 0 : index
    %25 = vector.load %arg5[%c0_26, %c0_27, %c0_28, %c0_29] : memref<1x1x2x128xf32, #tpu.memory_space<vmem>>, vector<1x1x1x128xf32>
    %26 = vector.shape_cast %25 : vector<1x1x1x128xf32> to vector<1x128xf32>
    %27 = vector.shape_cast %24 : vector<1x128xf32> to vector<1x1x1x128xf32>
    tpu.vector_store %arg5[%c0_26, %c0_27, %c0_28, %c0_29], %27 {strides = array<i32>} : memref<1x1x2x128xf32, #tpu.memory_space<vmem>>, vector<1x1x1x128xf32>,
    %28 = arith.mulf %18, %18 : vector<4x128xf32>
    %cst_30 = arith.constant dense<0.000000e+00> : vector<128xf32>
    %29 = vector.multi_reduction <add>, %28, %cst_30 [0] : vector<4x128xf32> to vector<128xf32>
    %30 = vector.shape_cast %29 : vector<128xf32> to vector<1x128xf32>
    %c0_31 = arith.constant 0 : index
    %c0_32 = arith.constant 0 : index
    %c1_33 = arith.constant 1 : index
    %c0_34 = arith.constant 0 : index
    %31 = vector.load %arg5[%c0_31, %c0_32, %c1_33, %c0_34] : memref<1x1x2x128xf32, #tpu.memory_space<vmem>>, vector<1x1x1x128xf32>
    %32 = vector.shape_cast %31 : vector<1x1x1x128xf32> to vector<1x128xf32>
    %33 = vector.shape_cast %30 : vector<1x128xf32> to vector<1x1x1x128xf32>
    tpu.vector_store %arg5[%c0_31, %c0_32, %c1_33, %c0_34], %33 {strides = array<i32>} : memref<1x1x2x128xf32, #tpu.memory_space<vmem>>, vector<1x1x1x128xf32>,
    return
  }
  func.func @transform_0(%arg0: i32, %arg1: i32) -> (i32, i32, i32, i32) {
    %c0_i32 = arith.constant 0 : i32
    %c0_i32_0 = arith.constant 0 : i32
    %c0_i32_1 = arith.constant 0 : i32
    return %arg0, %arg1, %c0_i32, %c0_i32_0 : i32, i32, i32, i32
  }
  func.func @transform_1(%arg0: i32, %arg1: i32) -> (i32, i32, i32) {
    %c0_i32 = arith.constant 0 : i32
    %c0_i32_0 = arith.constant 0 : i32
    %c0_i32_1 = arith.constant 0 : i32
    %c0_i32_2 = arith.constant 0 : i32
    return %c0_i32, %c0_i32_0, %c0_i32_1 : i32, i32, i32
  }
  func.func @transform_2(%arg0: i32, %arg1: i32) -> (i32, i32, i32, i32) {
    %c0_i32 = arith.constant 0 : i32
    %c0_i32_0 = arith.constant 0 : i32
    %c0_i32_1 = arith.constant 0 : i32
    return %arg0, %arg1, %c0_i32, %c0_i32_0 : i32, i32, i32, i32
  }
  func.func @transform_3(%arg0: i32, %arg1: i32) -> (i32, i32, i32, i32) {
    %c0_i32 = arith.constant 0 : i32
    %c0_i32_0 = arith.constant 0 : i32
    %c0_i32_1 = arith.constant 0 : i32
    return %arg0, %arg1, %c0_i32, %c0_i32_0 : i32, i32, i32, i32
  }
}

module attributes {stable_mosaic.version = 11 : i64} {
  func.func @_bn_relu_kernel(%arg0: i32, %arg1: i32, %arg2: memref<1x1x4x128xbf16, #tpu.memory_space<vmem>>, %arg3: memref<1x128xf32, #tpu.memory_space<vmem>>, %arg4: memref<1x128xf32, #tpu.memory_space<vmem>>, %arg5: memref<1x1x4x128xf32, #tpu.memory_space<vmem>>) attributes {dimension_semantics = [#tpu.dimension_semantics<parallel>, #tpu.dimension_semantics<parallel>], iteration_bounds = array<i64: 2, 4>, scalar_prefetch = 0 : i64, scratch_operands = 0 : i64, tpu.core_type = #tpu.core_type<tc>, window_params = [{transform_indices = @transform_0, window_bounds = array<i64: 1, 1, 4, 128>}, {pipeline_mode = #tpu.pipeline_mode<synchronous>, transform_indices = @transform_1, window_bounds = array<i64: 1, 128>}, {pipeline_mode = #tpu.pipeline_mode<synchronous>, transform_indices = @transform_2, window_bounds = array<i64: 1, 128>}, {transform_indices = @transform_3, window_bounds = array<i64: 1, 1, 4, 128>}]} {
    %c0 = arith.constant 0 : index
    %c0_0 = arith.constant 0 : index
    %c0_1 = arith.constant 0 : index
    %c0_2 = arith.constant 0 : index
    %0 = vector.load %arg2[%c0, %c0_0, %c0_1, %c0_2] : memref<1x1x4x128xbf16, #tpu.memory_space<vmem>>, vector<1x1x4x128xbf16>
    %1 = vector.shape_cast %0 : vector<1x1x4x128xbf16> to vector<4x128xbf16>
    %2 = arith.extf %1 : vector<4x128xbf16> to vector<4x128xf32>
    %c0_3 = arith.constant 0 : index
    %c0_4 = arith.constant 0 : index
    %3 = vector.load %arg3[%c0_3, %c0_4] : memref<1x128xf32, #tpu.memory_space<vmem>>, vector<1x128xf32>
    %4 = vector.broadcast %3 : vector<1x128xf32> to vector<4x128xf32>
    %5 = arith.mulf %2, %4 : vector<4x128xf32>
    %c0_5 = arith.constant 0 : index
    %c0_6 = arith.constant 0 : index
    %6 = vector.load %arg4[%c0_5, %c0_6] : memref<1x128xf32, #tpu.memory_space<vmem>>, vector<1x128xf32>
    %7 = vector.broadcast %6 : vector<1x128xf32> to vector<4x128xf32>
    %8 = arith.addf %5, %7 : vector<4x128xf32>
    %cst = arith.constant 0.000000e+00 : f32
    %9 = vector.broadcast %cst : f32 to vector<4x128xf32>
    %10 = arith.maximumf %8, %9 : vector<4x128xf32>
    %c0_7 = arith.constant 0 : index
    %c0_8 = arith.constant 0 : index
    %c0_9 = arith.constant 0 : index
    %c0_10 = arith.constant 0 : index
    %11 = vector.load %arg5[%c0_7, %c0_8, %c0_9, %c0_10] : memref<1x1x4x128xf32, #tpu.memory_space<vmem>>, vector<1x1x4x128xf32>
    %12 = vector.shape_cast %11 : vector<1x1x4x128xf32> to vector<4x128xf32>
    %13 = vector.shape_cast %10 : vector<4x128xf32> to vector<1x1x4x128xf32>
    tpu.vector_store %arg5[%c0_7, %c0_8, %c0_9, %c0_10], %13 {strides = array<i32>} : memref<1x1x4x128xf32, #tpu.memory_space<vmem>>, vector<1x1x4x128xf32>,
    return
  }
  func.func @transform_0(%arg0: i32, %arg1: i32) -> (i32, i32, i32, i32) {
    %c0_i32 = arith.constant 0 : i32
    %c0_i32_0 = arith.constant 0 : i32
    %c0_i32_1 = arith.constant 0 : i32
    return %arg0, %arg1, %c0_i32, %c0_i32_0 : i32, i32, i32, i32
  }
  func.func @transform_1(%arg0: i32, %arg1: i32) -> (i32, i32) {
    %c0_i32 = arith.constant 0 : i32
    %c0_i32_0 = arith.constant 0 : i32
    %c0_i32_1 = arith.constant 0 : i32
    return %c0_i32, %c0_i32_0 : i32, i32
  }
  func.func @transform_2(%arg0: i32, %arg1: i32) -> (i32, i32) {
    %c0_i32 = arith.constant 0 : i32
    %c0_i32_0 = arith.constant 0 : i32
    %c0_i32_1 = arith.constant 0 : i32
    return %c0_i32, %c0_i32_0 : i32, i32
  }
  func.func @transform_3(%arg0: i32, %arg1: i32) -> (i32, i32, i32, i32) {
    %c0_i32 = arith.constant 0 : i32
    %c0_i32_0 = arith.constant 0 : i32
    %c0_i32_1 = arith.constant 0 : i32
    return %arg0, %arg1, %c0_i32, %c0_i32_0 : i32, i32, i32, i32
  }
}

</mosaic_0001>

<llo_original>
// kernel: conv_block_forward.3
$region0: #{conv_block_forward.3}
  #allocation0 [shape = 'u32[]', space=smem, size = 0x4, offset = 0x4, fixed_abs, tag = 'smem constant byte address 0x4 - core index']
  #allocation1 [shape = 'u32[144,128]{1,0:T(1,128)}', space=vmem, size = 0x12000, scoped, tag = 'internal scratch']
  %s0 = inlined_call_operand.vmem [shape: bf16[2,4,4,128], index: 0, kind: input, shape index: {}]
  %s1 = inlined_call_operand.vmem [shape: f32[1,128], index: 1, kind: input, shape index: {}]
  %s2 = inlined_call_operand.vmem [shape: f32[1,128], index: 2, kind: input, shape index: {}]
  %s3 = inlined_call_operand.vmem [shape: f32[2,4,4,128], index: 3, kind: output, shape index: {}]
  %s4 = sld [smem:[#allocation0]]
  $region45: #{conv_block_forward.3} parent=0
    _
  %s6 = ssub.s32 1, %s4
  %s7 = scalar_select 0, %s6, %s4
  loop: start=0, step=1, limit=10
  $region2: #{conv_block_forward.3} parent=0 // loop_pre_header
    _
  $region3: #{conv_block_forward.3} parent=0 // loop_header
    %s9 = sphi 0, %s13
    %p10 = scmp.ge.s32.totalorder %s9, 10
    %s16 = sphi 0, %s28
    %s17 = sphi 0, %s24
    %s18 = sphi 0, %s16
    %s19 = sphi 0, %s17
    %s20 = sphi 0, %s18
    %s21 = sphi 0, %s19
    %s33 = sphi 0, %s35
    %s36 = sphi 0, %s33
    %s37 = sphi 0, %s36
    %s53 = sphi 0, %s37
    %s57 = sphi 0, %s57
    %s59 = sphi 0, %s57
    %s60 = sphi 0, %s59
    %s74 = sphi 0, %s60
    %s78 = sphi 0, %s78
    %s80 = sphi 0, %s78
    %s81 = sphi 0, %s80
    %s95 = sphi 0, %s81
    %s103 = sphi 0, %s105
    %s106 = sphi 0, %s103
    %s107 = sphi 0, %s106
    %s123 = sphi 0, %s107
  $region4: #{conv_block_forward.3} parent=0 // loop_header_branch
    %12 = sbr.rel (%p10) target = $region8
  $region5: #{conv_block_forward.3} parent=0 // loop_body
    %s14 = ssub.s32 %s9, 1
    %s15 = ssub.s32 %s9, 2
    %s22 = sadd.s32 1, %s17
    %p23 = scmp.ge.s32.totalorder %s22, 4
    %s24 = scalar_select %p23, 0, %s22
    %s25 = sadd.s32 1, %s16
    %s26 = scalar_select %p23, %s25, %s16
    %p27 = scmp.ge.s32.totalorder %s26, 2
    %s28 = scalar_select %p27, 0, %s26
    %s29 = ssub.s32 %s16, %s28
    %s30 = ssub.s32 %s17, %s24
    %s31 = sor.u32 %s29, %s30
    %p32 = scmp.eq.s32.totalorder %s31, 0
    %s34 = sadd.s32 %s33, 1
    %s35 = scalar_select %p32, %s33, %s34
    %p38 = pneg %p32
    %p39 = scmp.eq.s32.totalorder %s9, 7
    %p40 = por %p38, %p39
    %p41 = scmp.ne.s32.totalorder %s33, %s36
    %p42 = scmp.eq.s32.totalorder %s9, 0
    %p43 = por %p41, %p42
    %p44 = scmp.ne.s32.totalorder %s33, %s36
    %p45 = scmp.eq.s32.totalorder %s14, 7
    %p46 = por %p44, %p45
    %p47 = scmp.ne.s32.totalorder %s36, %s37
    %p48 = scmp.eq.s32.totalorder %s14, 0
    %p49 = por %p47, %p48
    %p50 = scmp.ne.s32.totalorder %s36, %s37
    %p51 = scmp.eq.s32.totalorder %s15, 7
    %p52 = por %p50, %p51
    %p54 = scmp.ne.s32.totalorder %s37, %s53
    %p55 = scmp.eq.s32.totalorder %s15, 0
    %p56 = por %p54, %p55
    %s58 = sadd.s32 %s57, 1
    %p61 = scmp.eq.s32.totalorder %s9, 7
    %p62 = scmp.ne.s32.totalorder %s57, %s59
    %p63 = scmp.eq.s32.totalorder %s9, 0
    %p64 = por %p62, %p63
    %p65 = scmp.ne.s32.totalorder %s57, %s59
    %p66 = scmp.eq.s32.totalorder %s14, 7
    %p67 = por %p65, %p66
    %p68 = scmp.ne.s32.totalorder %s59, %s60
    %p69 = scmp.eq.s32.totalorder %s14, 0
    %p70 = por %p68, %p69
    %p71 = scmp.ne.s32.totalorder %s59, %s60
    %p72 = scmp.eq.s32.totalorder %s15, 7
    %p73 = por %p71, %p72
    %p75 = scmp.ne.s32.totalorder %s60, %s74
    %p76 = scmp.eq.s32.totalorder %s15, 0
    %p77 = por %p75, %p76
    %s79 = sadd.s32 %s78, 1
    %p82 = scmp.eq.s32.totalorder %s9, 7
    %p83 = scmp.ne.s32.totalorder %s78, %s80
    %p84 = scmp.eq.s32.totalorder %s9, 0
    %p85 = por %p83, %p84
    %p86 = scmp.ne.s32.totalorder %s78, %s80
    %p87 = scmp.eq.s32.totalorder %s14, 7
    %p88 = por %p86, %p87
    %p89 = scmp.ne.s32.totalorder %s80, %s81
    %p90 = scmp.eq.s32.totalorder %s14, 0
    %p91 = por %p89, %p90
    %p92 = scmp.ne.s32.totalorder %s80, %s81
    %p93 = scmp.eq.s32.totalorder %s15, 7
    %p94 = por %p92, %p93
    %p96 = scmp.ne.s32.totalorder %s81, %s95
    %p97 = scmp.eq.s32.totalorder %s15, 0
    %p98 = por %p96, %p97
    %s99 = ssub.s32 %s16, %s28
    %s100 = ssub.s32 %s17, %s24
    %s101 = sor.u32 %s99, %s100
    %p102 = scmp.eq.s32.totalorder %s101, 0
    %s104 = sadd.s32 %s103, 1
    %s105 = scalar_select %p102, %s103, %s104
    %p108 = pneg %p102
    %p109 = scmp.eq.s32.totalorder %s9, 7
    %p110 = por %p108, %p109
    %p111 = scmp.ne.s32.totalorder %s103, %s106
    %p112 = scmp.eq.s32.totalorder %s9, 0
    %p113 = por %p111, %p112
    %p114 = scmp.ne.s32.totalorder %s103, %s106
    %p115 = scmp.eq.s32.totalorder %s14, 7
    %p116 = por %p114, %p115
    %p117 = scmp.ne.s32.totalorder %s106, %s107
    %p118 = scmp.eq.s32.totalorder %s14, 0
    %p119 = por %p117, %p118
    %p120 = scmp.ne.s32.totalorder %s106, %s107
    %p121 = scmp.eq.s32.totalorder %s15, 7
    %p122 = por %p120, %p121
    %p124 = scmp.ne.s32.totalorder %s107, %s123
    %p125 = scmp.eq.s32.totalorder %s15, 0
    %p126 = por %p124, %p125
    %p127 = scmp.le.s32.totalorder 1, %s9
    %p128 = scmp.lt.s32.totalorder %s9, 9
    %p129 = pnand %p127, %p128
    %p130 = pneg %p129
    // Predicated region
    $region9: #{conv_block_forward.3} parent=5 // pred_check
      _
    $region10: #{conv_block_forward.3} parent=5 // pred_check_branch
      %132 = sbr.rel (%p129) target = $region12
    $region11: #{conv_block_forward.3} parent=5 // pred_region
      %s133 = ssub.s32 %s9, 1
      // Predicated region
      $region13: #{conv_block_forward.3} parent=11 // pred_check
        %p134 = pneg %p70
      $region14: #{conv_block_forward.3} parent=11 // pred_check_branch
        %136 = sbr.rel (%p134) target = $region16
      $region15: #{conv_block_forward.3} parent=11 // pred_region
        _
      $region16: #{conv_block_forward.3} parent=11 // pred_fallthru
        _
      // Predicated region
      $region17: #{conv_block_forward.3} parent=11 // pred_check
        %p137 = pneg %p91
      $region18: #{conv_block_forward.3} parent=11 // pred_check_branch
        %139 = sbr.rel (%p137) target = $region20
      $region19: #{conv_block_forward.3} parent=11 // pred_region
        _
      $region20: #{conv_block_forward.3} parent=11 // pred_fallthru
        _
    $region12: #{conv_block_forward.3} parent=5 // pred_fallthru
      _
    %p140 = scmp.lt.s32.totalorder %s9, 8
    // Predicated region
    $region21: #{conv_block_forward.3} parent=5 // pred_check
      %p141 = pneg %p140
    $region22: #{conv_block_forward.3} parent=5 // pred_check_branch
      %143 = sbr.rel (%p141) target = $region24
    $region23: #{conv_block_forward.3} parent=5 // pred_region
      // Predicated region
      $region25: #{conv_block_forward.3} parent=23 // pred_check
        %p144 = pneg %p43
      $region26: #{conv_block_forward.3} parent=23 // pred_check_branch
        %146 = sbr.rel (%p144) target = $region28
      $region27: #{conv_block_forward.3} parent=23 // pred_region
        %p147 = scmp.lt.s32.totalorder %s16, 1
        %s148 = scalar_select %p147, %s16, 1
        %p149 = scmp.lt.s32.totalorder %s17, 3
        %s150 = scalar_select %p149, %s17, 3
        %s151 = smul.addr %s148, 4
        %s152 = sadd.s32 %s150, %s151
        %s153 = smul.addr %s152, 2
        %s154 = scalar_lea.vmem %s0, %s153
      $region28: #{conv_block_forward.3} parent=23 // pred_fallthru
        _
    $region24: #{conv_block_forward.3} parent=5 // pred_fallthru
      _
    %p155 = scmp.le.s32.totalorder 1, %s9
    %p156 = scmp.lt.s32.totalorder %s9, 9
    %p157 = pnand %p155, %p156
    %p158 = pneg %p157
    // Predicated region
    $region29: #{conv_block_forward.3} parent=5 // pred_check
      _
    $region30: #{conv_block_forward.3} parent=5 // pred_check_branch
      %160 = sbr.rel (%p157) target = $region32
    $region31: #{conv_block_forward.3} parent=5 // pred_region
      %s161 = ssub.s32 %s9, 1
      %p162 = scmp.lt.s32.totalorder %s18, 1
      %s163 = scalar_select %p162, %s18, 1
      %p164 = scmp.lt.s32.totalorder %s19, 3
      %s165 = scalar_select %p164, %s19, 3
      %s166 = smul.addr %s163, 4
      %s167 = sadd.s32 %s165, %s166
      %s168 = smul.addr %s167, 2
      %s169 = scalar_lea.vmem %s0, %s168
      %p170 = pneg %p49
      %p171 = pneg %p46
      %p172 = pneg %p70
      %p173 = pneg %p67
      %p174 = pneg %p91
      %p175 = pneg %p88
      %p176 = pneg %p119
      %p177 = pneg %p116
      %p178 = scmp.lt.s32.totalorder %s18, 1
      %s179 = scalar_select %p178, %s18, 1
      %p180 = scmp.lt.s32.totalorder %s19, 3
      %s181 = scalar_select %p180, %s19, 3
      %s182 = smul.addr %s179, 4
      %s183 = sadd.s32 %s181, %s182
      %s184 = smul.addr %s183, 4
      %s185 = scalar_lea.vmem %s3, %s184
      %p186 = scmp.lt.s32.totalorder %s18, 1
      %s187 = scalar_select %p186, %s18, 1
      %p188 = scmp.lt.s32.totalorder %s19, 3
      %s189 = scalar_select %p188, %s19, 3
      %s190 = smul.addr %s187, 4
      %s191 = sadd.s32 %s189, %s190
      %s192 = smul.addr %s191, 2
      %s193 = scalar_lea.vmem %s0, %s192
      %p194 = scmp.lt.s32.totalorder %s18, 1
      %s195 = scalar_select %p194, %s18, 1
      %p196 = scmp.lt.s32.totalorder %s19, 3
      %s197 = scalar_select %p196, %s19, 3
      %s198 = smul.addr %s195, 4
      %s199 = sadd.s32 %s197, %s198
      %s200 = smul.addr %s199, 4
      %s201 = scalar_lea.vmem %s3, %s200
      %v202 = vld [vmem:[%s193] sm:$0x3]
      %v203 = vunpack.c.l.bf16 %v202
      %v204 = vld [vmem:[%s1] sm:$0x1]
      %v206 = vlaneseq
      %v207 = vshrl.u32 %v206, 7
      %v208 = vsub.s32 0, %v207
      %v209 = vrot.slane %v204, %v208
      %v211 = vmul.f32 %v203, %v209
      %v212 = vld [vmem:[%s2] sm:$0x1]
      %v214 = vlaneseq
      %v215 = vshrl.u32 %v214, 7
      %v216 = vsub.s32 0, %v215
      %v217 = vrot.slane %v212, %v216
      %v219 = vadd.f32 %v211, %v217
      %v220 = vmax.f32 %v219, 0.0
      %221 = vst [vmem:[%s201] sm:$0xf] %v220
      %p222 = scmp.lt.s32.totalorder %s18, 1
      %s223 = scalar_select %p222, %s18, 1
      %p224 = scmp.lt.s32.totalorder %s19, 3
      %s225 = scalar_select %p224, %s19, 3
      %s226 = smul.addr %s223, 4
      %s227 = sadd.s32 %s225, %s226
      %s228 = smul.addr %s227, 4
      %s229 = scalar_lea.vmem %s3, %s228
      // Predicated region
      $region33: #{conv_block_forward.3} parent=31 // pred_check
        %p230 = pneg %p116
      $region34: #{conv_block_forward.3} parent=31 // pred_check_branch
        %232 = sbr.rel (%p230) target = $region36
      $region35: #{conv_block_forward.3} parent=31 // pred_region
        _
      $region36: #{conv_block_forward.3} parent=31 // pred_fallthru
        _
    $region32: #{conv_block_forward.3} parent=5 // pred_fallthru
      _
    %p233 = scmp.le.s32.totalorder 2, %s9
    // Predicated region
    $region37: #{conv_block_forward.3} parent=5 // pred_check
      %p234 = pneg %p233
    $region38: #{conv_block_forward.3} parent=5 // pred_check_branch
      %236 = sbr.rel (%p234) target = $region40
    $region39: #{conv_block_forward.3} parent=5 // pred_region
      %s237 = ssub.s32 %s9, 2
      // Predicated region
      $region41: #{conv_block_forward.3} parent=39 // pred_check
        %p238 = pneg %p122
      $region42: #{conv_block_forward.3} parent=39 // pred_check_branch
        %240 = sbr.rel (%p238) target = $region44
      $region43: #{conv_block_forward.3} parent=39 // pred_region
        %p241 = scmp.lt.s32.totalorder %s20, 1
        %s242 = scalar_select %p241, %s20, 1
        %p243 = scmp.lt.s32.totalorder %s21, 3
        %s244 = scalar_select %p243, %s21, 3
        %s245 = smul.addr %s242, 4
        %s246 = sadd.s32 %s244, %s245
        %s247 = smul.addr %s246, 4
        %s248 = scalar_lea.vmem %s3, %s247
      $region44: #{conv_block_forward.3} parent=39 // pred_fallthru
        _
    $region40: #{conv_block_forward.3} parent=5 // pred_fallthru
      _
  $region6: #{conv_block_forward.3} parent=0 // loop_footer
    %s13 = sadd.s32 1, %s9
  $region7: #{conv_block_forward.3} parent=0 // loop_footer_branch
    %8 = sbr.rel target = $region3
  $region8: #{conv_block_forward.3} parent=0 // loop_exit
    _

// kernel: conv_block_forward.2
$region0: #{conv_block_forward.2}
  #allocation0 [shape = 'u32[]', space=smem, size = 0x4, offset = 0x4, fixed_abs, tag = 'smem constant byte address 0x4 - core index']
  #allocation1 [shape = 'u32[144,128]{1,0:T(1,128)}', space=vmem, size = 0x12000, scoped, tag = 'internal scratch']
  %s0 = inlined_call_operand.vmem [shape: bf16[2,4,6,72], index: 0, kind: input, shape index: {}]
  %s1 = inlined_call_operand.vmem [shape: bf16[3,72,128], index: 1, kind: input, shape index: {}]
  %s2 = inlined_call_operand.vmem [shape: bf16[2,4,4,128], index: 2, kind: output, shape index: {0}]
  %s3 = inlined_call_operand.vmem [shape: f32[2,4,2,128], index: 3, kind: output, shape index: {1}]
  %4 = xla_tuple %s2, %s3
  %s5 = sld [smem:[#allocation0]]
  $region49: #{conv_block_forward.2} parent=0
    _
  %s7 = ssub.s32 1, %s5
  %s8 = scalar_select 0, %s7, %s5
  loop: start=0, step=1, limit=10
  $region2: #{conv_block_forward.2} parent=0 // loop_pre_header
    _
  $region3: #{conv_block_forward.2} parent=0 // loop_header
    %s10 = sphi 0, %s14
    %p11 = scmp.ge.s32.totalorder %s10, 10
    %s17 = sphi 0, %s29
    %s18 = sphi 0, %s25
    %s19 = sphi 0, %s17
    %s20 = sphi 0, %s18
    %s21 = sphi 0, %s19
    %s22 = sphi 0, %s20
    %s34 = sphi 0, %s36
    %s37 = sphi 0, %s34
    %s38 = sphi 0, %s37
    %s54 = sphi 0, %s38
    %s58 = sphi 0, %s58
    %s60 = sphi 0, %s58
    %s61 = sphi 0, %s60
    %s75 = sphi 0, %s61
    %s83 = sphi 0, %s85
    %s86 = sphi 0, %s83
    %s87 = sphi 0, %s86
    %s103 = sphi 0, %s87
    %s111 = sphi 0, %s113
    %s114 = sphi 0, %s111
    %s115 = sphi 0, %s114
    %s131 = sphi 0, %s115
  $region4: #{conv_block_forward.2} parent=0 // loop_header_branch
    %13 = sbr.rel (%p11) target = $region8
  $region5: #{conv_block_forward.2} parent=0 // loop_body
    %s15 = ssub.s32 %s10, 1
    %s16 = ssub.s32 %s10, 2
    %s23 = sadd.s32 1, %s18
    %p24 = scmp.ge.s32.totalorder %s23, 4
    %s25 = scalar_select %p24, 0, %s23
    %s26 = sadd.s32 1, %s17
    %s27 = scalar_select %p24, %s26, %s17
    %p28 = scmp.ge.s32.totalorder %s27, 2
    %s29 = scalar_select %p28, 0, %s27
    %s30 = ssub.s32 %s17, %s29
    %s31 = ssub.s32 %s18, %s25
    %s32 = sor.u32 %s30, %s31
    %p33 = scmp.eq.s32.totalorder %s32, 0
    %s35 = sadd.s32 %s34, 1
    %s36 = scalar_select %p33, %s34, %s35
    %p39 = pneg %p33
    %p40 = scmp.eq.s32.totalorder %s10, 7
    %p41 = por %p39, %p40
    %p42 = scmp.ne.s32.totalorder %s34, %s37
    %p43 = scmp.eq.s32.totalorder %s10, 0
    %p44 = por %p42, %p43
    %p45 = scmp.ne.s32.totalorder %s34, %s37
    %p46 = scmp.eq.s32.totalorder %s15, 7
    %p47 = por %p45, %p46
    %p48 = scmp.ne.s32.totalorder %s37, %s38
    %p49 = scmp.eq.s32.totalorder %s15, 0
    %p50 = por %p48, %p49
    %p51 = scmp.ne.s32.totalorder %s37, %s38
    %p52 = scmp.eq.s32.totalorder %s16, 7
    %p53 = por %p51, %p52
    %p55 = scmp.ne.s32.totalorder %s38, %s54
    %p56 = scmp.eq.s32.totalorder %s16, 0
    %p57 = por %p55, %p56
    %s59 = sadd.s32 %s58, 1
    %p62 = scmp.eq.s32.totalorder %s10, 7
    %p63 = scmp.ne.s32.totalorder %s58, %s60
    %p64 = scmp.eq.s32.totalorder %s10, 0
    %p65 = por %p63, %p64
    %p66 = scmp.ne.s32.totalorder %s58, %s60
    %p67 = scmp.eq.s32.totalorder %s15, 7
    %p68 = por %p66, %p67
    %p69 = scmp.ne.s32.totalorder %s60, %s61
    %p70 = scmp.eq.s32.totalorder %s15, 0
    %p71 = por %p69, %p70
    %p72 = scmp.ne.s32.totalorder %s60, %s61
    %p73 = scmp.eq.s32.totalorder %s16, 7
    %p74 = por %p72, %p73
    %p76 = scmp.ne.s32.totalorder %s61, %s75
    %p77 = scmp.eq.s32.totalorder %s16, 0
    %p78 = por %p76, %p77
    %s79 = ssub.s32 %s17, %s29
    %s80 = ssub.s32 %s18, %s25
    %s81 = sor.u32 %s79, %s80
    %p82 = scmp.eq.s32.totalorder %s81, 0
    %s84 = sadd.s32 %s83, 1
    %s85 = scalar_select %p82, %s83, %s84
    %p88 = pneg %p82
    %p89 = scmp.eq.s32.totalorder %s10, 7
    %p90 = por %p88, %p89
    %p91 = scmp.ne.s32.totalorder %s83, %s86
    %p92 = scmp.eq.s32.totalorder %s10, 0
    %p93 = por %p91, %p92
    %p94 = scmp.ne.s32.totalorder %s83, %s86
    %p95 = scmp.eq.s32.totalorder %s15, 7
    %p96 = por %p94, %p95
    %p97 = scmp.ne.s32.totalorder %s86, %s87
    %p98 = scmp.eq.s32.totalorder %s15, 0
    %p99 = por %p97, %p98
    %p100 = scmp.ne.s32.totalorder %s86, %s87
    %p101 = scmp.eq.s32.totalorder %s16, 7
    %p102 = por %p100, %p101
    %p104 = scmp.ne.s32.totalorder %s87, %s103
    %p105 = scmp.eq.s32.totalorder %s16, 0
    %p106 = por %p104, %p105
    %s107 = ssub.s32 %s17, %s29
    %s108 = ssub.s32 %s18, %s25
    %s109 = sor.u32 %s107, %s108
    %p110 = scmp.eq.s32.totalorder %s109, 0
    %s112 = sadd.s32 %s111, 1
    %s113 = scalar_select %p110, %s111, %s112
    %p116 = pneg %p110
    %p117 = scmp.eq.s32.totalorder %s10, 7
    %p118 = por %p116, %p117
    %p119 = scmp.ne.s32.totalorder %s111, %s114
    %p120 = scmp.eq.s32.totalorder %s10, 0
    %p121 = por %p119, %p120
    %p122 = scmp.ne.s32.totalorder %s111, %s114
    %p123 = scmp.eq.s32.totalorder %s15, 7
    %p124 = por %p122, %p123
    %p125 = scmp.ne.s32.totalorder %s114, %s115
    %p126 = scmp.eq.s32.totalorder %s15, 0
    %p127 = por %p125, %p126
    %p128 = scmp.ne.s32.totalorder %s114, %s115
    %p129 = scmp.eq.s32.totalorder %s16, 7
    %p130 = por %p128, %p129
    %p132 = scmp.ne.s32.totalorder %s115, %s131
    %p133 = scmp.eq.s32.totalorder %s16, 0
    %p134 = por %p132, %p133
    %p135 = scmp.le.s32.totalorder 1, %s10
    %p136 = scmp.lt.s32.totalorder %s10, 9
    %p137 = pnand %p135, %p136
    %p138 = pneg %p137
    // Predicated region
    $region9: #{conv_block_forward.2} parent=5 // pred_check
      _
    $region10: #{conv_block_forward.2} parent=5 // pred_check_branch
      %140 = sbr.rel (%p137) target = $region12
    $region11: #{conv_block_forward.2} parent=5 // pred_region
      %s141 = ssub.s32 %s10, 1
      // Predicated region
      $region13: #{conv_block_forward.2} parent=11 // pred_check
        %p142 = pneg %p71
      $region14: #{conv_block_forward.2} parent=11 // pred_check_branch
        %144 = sbr.rel (%p142) target = $region16
      $region15: #{conv_block_forward.2} parent=11 // pred_region
        _
      $region16: #{conv_block_forward.2} parent=11 // pred_fallthru
        _
    $region12: #{conv_block_forward.2} parent=5 // pred_fallthru
      _
    %p145 = scmp.lt.s32.totalorder %s10, 8
    // Predicated region
    $region17: #{conv_block_forward.2} parent=5 // pred_check
      %p146 = pneg %p145
    $region18: #{conv_block_forward.2} parent=5 // pred_check_branch
      %148 = sbr.rel (%p146) target = $region20
    $region19: #{conv_block_forward.2} parent=5 // pred_region
      // Predicated region
      $region21: #{conv_block_forward.2} parent=19 // pred_check
        %p149 = pneg %p44
      $region22: #{conv_block_forward.2} parent=19 // pred_check_branch
        %151 = sbr.rel (%p149) target = $region24
      $region23: #{conv_block_forward.2} parent=19 // pred_region
        %p152 = scmp.lt.s32.totalorder %s17, 1
        %s153 = scalar_select %p152, %s17, 1
        %p154 = scmp.lt.s32.totalorder %s18, 3
        %s155 = scalar_select %p154, %s18, 3
        %s156 = smul.addr %s153, 4
        %s157 = sadd.s32 %s155, %s156
        %s158 = smul.addr %s157, 4
        %s159 = scalar_lea.vmem %s0, %s158
      $region24: #{conv_block_forward.2} parent=19 // pred_fallthru
        _
    $region20: #{conv_block_forward.2} parent=5 // pred_fallthru
      _
    %p160 = scmp.le.s32.totalorder 1, %s10
    %p161 = scmp.lt.s32.totalorder %s10, 9
    %p162 = pnand %p160, %p161
    %p163 = pneg %p162
    // Predicated region
    $region25: #{conv_block_forward.2} parent=5 // pred_check
      _
    $region26: #{conv_block_forward.2} parent=5 // pred_check_branch
      %165 = sbr.rel (%p162) target = $region28
    $region27: #{conv_block_forward.2} parent=5 // pred_region
      %s166 = ssub.s32 %s10, 1
      %p167 = scmp.lt.s32.totalorder %s19, 1
      %s168 = scalar_select %p167, %s19, 1
      %p169 = scmp.lt.s32.totalorder %s20, 3
      %s170 = scalar_select %p169, %s20, 3
      %s171 = smul.addr %s168, 4
      %s172 = sadd.s32 %s170, %s171
      %s173 = smul.addr %s172, 4
      %s174 = scalar_lea.vmem %s0, %s173
      %p175 = pneg %p50
      %p176 = pneg %p47
      %p177 = pneg %p71
      %p178 = pneg %p68
      %p179 = pneg %p99
      %p180 = pneg %p96
      %p181 = scmp.lt.s32.totalorder %s19, 1
      %s182 = scalar_select %p181, %s19, 1
      %p183 = scmp.lt.s32.totalorder %s20, 3
      %s184 = scalar_select %p183, %s20, 3
      %s185 = smul.addr %s182, 4
      %s186 = sadd.s32 %s184, %s185
      %s187 = smul.addr %s186, 2
      %s188 = scalar_lea.vmem %s2, %s187
      %p189 = pneg %p127
      %p190 = pneg %p124
      %p191 = scmp.lt.s32.totalorder %s19, 1
      %s192 = scalar_select %p191, %s19, 1
      %p193 = scmp.lt.s32.totalorder %s20, 3
      %s194 = scalar_select %p193, %s20, 3
      %s195 = smul.addr %s192, 4
      %s196 = sadd.s32 %s194, %s195
      %s197 = smul.addr %s196, 2
      %s198 = scalar_lea.vmem %s3, %s197
      %p199 = scmp.lt.s32.totalorder %s19, 1
      %s200 = scalar_select %p199, %s19, 1
      %p201 = scmp.lt.s32.totalorder %s20, 3
      %s202 = scalar_select %p201, %s20, 3
      %s203 = smul.addr %s200, 4
      %s204 = sadd.s32 %s202, %s203
      %s205 = smul.addr %s204, 4
      %s206 = scalar_lea.vmem %s0, %s205
      %p207 = scmp.lt.s32.totalorder %s19, 1
      %s208 = scalar_select %p207, %s19, 1
      %p209 = scmp.lt.s32.totalorder %s20, 3
      %s210 = scalar_select %p209, %s20, 3
      %s211 = smul.addr %s208, 4
      %s212 = sadd.s32 %s210, %s211
      %s213 = smul.addr %s212, 2
      %s214 = scalar_lea.vmem %s2, %s213
      %p215 = scmp.lt.s32.totalorder %s19, 1
      %s216 = scalar_select %p215, %s19, 1
      %p217 = scmp.lt.s32.totalorder %s20, 3
      %s218 = scalar_select %p217, %s20, 3
      %s219 = smul.addr %s216, 4
      %s220 = sadd.s32 %s218, %s219
      %s221 = smul.addr %s220, 2
      %s222 = scalar_lea.vmem %s3, %s221
      %v224 = vld [vmem:[%s206] sm:$0x3]
      %v225 = vld [vmem:[%s1] sm:$0xf]
      %v226 = vld [vmem:[%s1 + $0x4] sm:$0xf]
      %v227 = vld [vmem:[%s1 + $0x8] sm:$0xf]
      %v228 = vld [vmem:[%s1 + $0xc] sm:$0xf]
      %v229 = vld [vmem:[%s1 + $0x10] sm:$0xf]
      %v230 = vld [vmem:[%s1 + $0x14] sm:$0xf]
      %v231 = vld [vmem:[%s1 + $0x18] sm:$0xf]
      %v232 = vld [vmem:[%s1 + $0x1c] sm:$0xf]
      %v233 = vld [vmem:[%s1 + $0x20] sm:$0xf]
      %v234 = vld [vmem:[%s206] sm:$0x7]
      %s235 = scalar_lea.vmem %s1, 36
      %v236 = vld [vmem:[%s235] sm:$0xf]
      %v237 = vld [vmem:[%s235 + $0x4] sm:$0xf]
      %v238 = vld [vmem:[%s235 + $0x8] sm:$0xf]
      %v239 = vld [vmem:[%s235 + $0xc] sm:$0xf]
      %v240 = vld [vmem:[%s235 + $0x10] sm:$0xf]
      %v241 = vld [vmem:[%s235 + $0x14] sm:$0xf]
      %v242 = vld [vmem:[%s235 + $0x18] sm:$0xf]
      %v243 = vld [vmem:[%s235 + $0x1c] sm:$0xf]
      %v244 = vld [vmem:[%s235 + $0x20] sm:$0xf]
      %v246 = vunpack.c.l.b16 %v234
      %v247 = vpack.c.b16 %v246, %v246
      %v249 = vshrl.u32 %v247, 16
      %v251 = vshll.u32 %v247, 16
      %v253 = vrot.slane %v251, 1
      %v254 = vor.u32 %v249, %v253
      %v264 = vunpack.c.l.b16 %v236
      %v265 = vunpack.c.l.b16 %v237
      %v266 = vunpack.c.l.b16 %v238
      %v267 = vunpack.c.l.b16 %v239
      %v268 = vunpack.c.l.b16 %v240
      %v269 = vunpack.c.l.b16 %v241
      %v270 = vunpack.c.l.b16 %v242
      %v271 = vunpack.c.l.b16 %v243
      %v272 = vunpack.c.l.b16 %v244
      %v273 = vpack.c.b16 %v265, %v264
      %v274 = vpack.c.b16 %v267, %v266
      %v275 = vpack.c.b16 %v269, %v268
      %v276 = vpack.c.b16 %v271, %v270
      %v277 = vpack.c.b16 %v272, %v272
      %vm282 = vcmask 588800
      %v284 = vsel %vm282, %v254, 0
      %vm286 = vcmask 1043456
      %v288 = vsel %vm286, %v277, 0
      %290 = vmatprep.subr.bf16.mxu0 0
      %291 = vmatpush1.bf16.msra.mxu0 0
      %292 = vmatprep.subr.bf16.mxu0 0
      %293 = vmatpush1.bf16.msra.mxu0 0
      %294 = vmatprep.subr.bf16.mxu0 0
      %295 = vmatpush1.bf16.msra.mxu0 0
      %296 = vmatprep.subr.bf16.mxu0 0
      %297 = vmatpush1.bf16.msra.mxu0 %v288
      %298 = vmatprep.subr.bf16.mxu0 0
      %299 = vmatpush1.bf16.msra.mxu0 %v276
      %300 = vmatprep.subr.bf16.mxu0 0
      %301 = vmatpush1.bf16.msra.mxu0 %v275
      %302 = vmatprep.subr.bf16.mxu0 0
      %303 = vmatpush1.bf16.msra.mxu0 %v274
      %304 = vmatprep.subr.bf16.mxu0 0
      %305 = vmatpush1.bf16.msra.mxu0 %v273
      %306 = vmatprep.subr.bf16.mxu0 0
      %307 = vmatpush2.bf16.msra.mxu0 0
      %308 = vmatprep.subr.bf16.mxu0 0
      %309 = vmatpush2.bf16.msra.mxu0 0
      %310 = vmatprep.subr.bf16.mxu0 0
      %311 = vmatpush2.bf16.msra.mxu0 0
      %312 = vmatprep.subr.bf16.mxu0 0
      %313 = vmatpush2.bf16.msra.mxu0 0
      %314 = vmatprep.subr.bf16.mxu0 0
      %315 = vmatpush2.bf16.msra.mxu0 0
      %316 = vmatprep.subr.bf16.mxu0 0
      %317 = vmatpush2.bf16.msra.mxu0 0
      %318 = vmatprep.subr.bf16.mxu0 0
      %319 = vmatpush2.bf16.msra.mxu0 0
      %320 = vmatprep.subr.bf16.mxu0 0
      %321 = vmatpush2.bf16.msra.mxu0 0
      %322 = vmatprep.mubr.bf16.mxu0 0
      %323 = vmatmul.mubr.bf16.gmra.mxu0 %v284
      %v324 = vpop.f32.mrf.mxu0
      %v325 = vadd.f32 0.0, %v324
      %v326 = vpop.f32.mrf.mxu0
      %v327 = vpop.f32.mrf.mxu0
      %v328 = vpop.f32.mrf.mxu0
      %329 = vdwg.mxu0
      %v339 = vunpack.c.l.b16 %v225
      %v340 = vunpack.c.l.b16 %v226
      %v341 = vunpack.c.l.b16 %v227
      %v342 = vunpack.c.l.b16 %v228
      %v343 = vunpack.c.l.b16 %v229
      %v344 = vunpack.c.l.b16 %v230
      %v345 = vunpack.c.l.b16 %v231
      %v346 = vunpack.c.l.b16 %v232
      %v347 = vunpack.c.l.b16 %v233
      %v348 = vpack.c.b16 %v340, %v339
      %v349 = vpack.c.b16 %v342, %v341
      %v350 = vpack.c.b16 %v344, %v343
      %v351 = vpack.c.b16 %v346, %v345
      %v352 = vpack.c.b16 %v347, %v347
      %v358 = vsel %vm282, %v224, 0
      %v361 = vsel %vm286, %v352, 0
      %363 = vmatprep.subr.bf16.mxu0 0
      %364 = vmatpush1.bf16.msra.mxu0 0
      %365 = vmatprep.subr.bf16.mxu0 0
      %366 = vmatpush1.bf16.msra.mxu0 0
      %367 = vmatprep.subr.bf16.mxu0 0
      %368 = vmatpush1.bf16.msra.mxu0 0
      %369 = vmatprep.subr.bf16.mxu0 0
      %370 = vmatpush1.bf16.msra.mxu0 %v361
      %371 = vmatprep.subr.bf16.mxu0 0
      %372 = vmatpush1.bf16.msra.mxu0 %v351
      %373 = vmatprep.subr.bf16.mxu0 0
      %374 = vmatpush1.bf16.msra.mxu0 %v350
      %375 = vmatprep.subr.bf16.mxu0 0
      %376 = vmatpush1.bf16.msra.mxu0 %v349
      %377 = vmatprep.subr.bf16.mxu0 0
      %378 = vmatpush1.bf16.msra.mxu0 %v348
      %379 = vmatprep.subr.bf16.mxu0 0
      %380 = vmatpush2.bf16.msra.mxu0 0
      %381 = vmatprep.subr.bf16.mxu0 0
      %382 = vmatpush2.bf16.msra.mxu0 0
      %383 = vmatprep.subr.bf16.mxu0 0
      %384 = vmatpush2.bf16.msra.mxu0 0
      %385 = vmatprep.subr.bf16.mxu0 0
      %386 = vmatpush2.bf16.msra.mxu0 0
      %387 = vmatprep.subr.bf16.mxu0 0
      %388 = vmatpush2.bf16.msra.mxu0 0
      %389 = vmatprep.subr.bf16.mxu0 0
      %390 = vmatpush2.bf16.msra.mxu0 0
      %391 = vmatprep.subr.bf16.mxu0 0
      %392 = vmatpush2.bf16.msra.mxu0 0
      %393 = vmatprep.subr.bf16.mxu0 0
      %394 = vmatpush2.bf16.msra.mxu0 0
      %395 = vmatprep.mubr.bf16.mxu0 0
      %396 = vmatmul.mubr.bf16.gmra.mxu0 %v358
      %v397 = vpop.f32.mrf.mxu0
      %v398 = vadd.f32 %v325, %v397
      %v399 = vpop.f32.mrf.mxu0
      %v400 = vpop.f32.mrf.mxu0
      %v401 = vpop.f32.mrf.mxu0
      %402 = vdwg.mxu0
      %v403 = vld [vmem:[%s206] sm:$0x6]
      %s404 = scalar_lea.vmem %s1, 72
      %v405 = vld [vmem:[%s404] sm:$0xf]
      %v406 = vld [vmem:[%s404 + $0x4] sm:$0xf]
      %v407 = vld [vmem:[%s404 + $0x8] sm:$0xf]
      %v408 = vld [vmem:[%s404 + $0xc] sm:$0xf]
      %v409 = vld [vmem:[%s404 + $0x10] sm:$0xf]
      %v410 = vld [vmem:[%s404 + $0x14] sm:$0xf]
      %v411 = vld [vmem:[%s404 + $0x18] sm:$0xf]
      %v412 = vld [vmem:[%s404 + $0x1c] sm:$0xf]
      %v413 = vld [vmem:[%s404 + $0x20] sm:$0xf]
      %v415 = vunpack.c.l.b16 %v403
      %v416 = vpack.c.b16 %v415, %v415
      %v417 = vrot.slane %v416, 1
      %v427 = vunpack.c.l.b16 %v405
      %v428 = vunpack.c.l.b16 %v406
      %v429 = vunpack.c.l.b16 %v407
      %v430 = vunpack.c.l.b16 %v408
      %v431 = vunpack.c.l.b16 %v409
      %v432 = vunpack.c.l.b16 %v410
      %v433 = vunpack.c.l.b16 %v411
      %v434 = vunpack.c.l.b16 %v412
      %v435 = vunpack.c.l.b16 %v413
      %v436 = vpack.c.b16 %v428, %v427
      %v437 = vpack.c.b16 %v430, %v429
      %v438 = vpack.c.b16 %v432, %v431
      %v439 = vpack.c.b16 %v434, %v433
      %v440 = vpack.c.b16 %v435, %v435
      %v446 = vsel %vm282, %v417, 0
      %v449 = vsel %vm286, %v440, 0
      %451 = vmatprep.subr.bf16.mxu0 0
      %452 = vmatpush1.bf16.msra.mxu0 0
      %453 = vmatprep.subr.bf16.mxu0 0
      %454 = vmatpush1.bf16.msra.mxu0 0
      %455 = vmatprep.subr.bf16.mxu0 0
      %456 = vmatpush1.bf16.msra.mxu0 0
      %457 = vmatprep.subr.bf16.mxu0 0
      %458 = vmatpush1.bf16.msra.mxu0 %v449
      %459 = vmatprep.subr.bf16.mxu0 0
      %460 = vmatpush1.bf16.msra.mxu0 %v439
      %461 = vmatprep.subr.bf16.mxu0 0
      %462 = vmatpush1.bf16.msra.mxu0 %v438
      %463 = vmatprep.subr.bf16.mxu0 0
      %464 = vmatpush1.bf16.msra.mxu0 %v437
      %465 = vmatprep.subr.bf16.mxu0 0
      %466 = vmatpush1.bf16.msra.mxu0 %v436
      %467 = vmatprep.subr.bf16.mxu0 0
      %468 = vmatpush2.bf16.msra.mxu0 0
      %469 = vmatprep.subr.bf16.mxu0 0
      %470 = vmatpush2.bf16.msra.mxu0 0
      %471 = vmatprep.subr.bf16.mxu0 0
      %472 = vmatpush2.bf16.msra.mxu0 0
      %473 = vmatprep.subr.bf16.mxu0 0
      %474 = vmatpush2.bf16.msra.mxu0 0
      %475 = vmatprep.subr.bf16.mxu0 0
      %476 = vmatpush2.bf16.msra.mxu0 0
      %477 = vmatprep.subr.bf16.mxu0 0
      %478 = vmatpush2.bf16.msra.mxu0 0
      %479 = vmatprep.subr.bf16.mxu0 0
      %480 = vmatpush2.bf16.msra.mxu0 0
      %481 = vmatprep.subr.bf16.mxu0 0
      %482 = vmatpush2.bf16.msra.mxu0 0
      %483 = vmatprep.mubr.bf16.mxu0 0
      %484 = vmatmul.mubr.bf16.gmra.mxu0 %v446
      %v485 = vpop.f32.mrf.mxu0
      %v486 = vadd.f32 0.0, %v485
      %v487 = vpop.f32.mrf.mxu0
      %v488 = vpop.f32.mrf.mxu0
      %v489 = vpop.f32.mrf.mxu0
      %490 = vdwg.mxu0
      %v491 = vadd.f32 %v398, %v486
      %v492 = vpack.c.bf16 %v491, %v491
      %493 = vst [vmem:[%s214] sm:$0x3] %v492
      %v494 = vsel %vm286, %v491, 0.0
      %v495 = vrot.slane %v494, 4
      %v496 = vadd.f32 %v494, %v495
      %v497 = vrot.slane %v496, 2
      %v498 = vadd.f32 %v496, %v497
      %v499 = vrot.slane %v498, 1
      %v500 = vadd.f32 %v498, %v499
      %501 = vst [vmem:[%s222] sm:$0x1] %v500
      %v502 = vmul.f32 %v491, %v491
      %v503 = vsel %vm286, %v502, 0.0
      %v504 = vrot.slane %v503, 4
      %v505 = vadd.f32 %v503, %v504
      %v506 = vrot.slane %v505, 2
      %v507 = vadd.f32 %v505, %v506
      %v508 = vrot.slane %v507, 1
      %v509 = vadd.f32 %v507, %v508
      %510 = vst [vmem:[%s222 + $0x1] sm:$0x1] %v509
      %p511 = scmp.lt.s32.totalorder %s19, 1
      %s512 = scalar_select %p511, %s19, 1
      %p513 = scmp.lt.s32.totalorder %s20, 3
      %s514 = scalar_select %p513, %s20, 3
      %s515 = smul.addr %s512, 4
      %s516 = sadd.s32 %s514, %s515
      %s517 = smul.addr %s516, 2
      %s518 = scalar_lea.vmem %s2, %s517
      %p519 = scmp.lt.s32.totalorder %s19, 1
      %s520 = scalar_select %p519, %s19, 1
      %p521 = scmp.lt.s32.totalorder %s20, 3
      %s522 = scalar_select %p521, %s20, 3
      %s523 = smul.addr %s520, 4
      %s524 = sadd.s32 %s522, %s523
      %s525 = smul.addr %s524, 2
      %s526 = scalar_lea.vmem %s3, %s525
      // Predicated region
      $region29: #{conv_block_forward.2} parent=27 // pred_check
        %p527 = pneg %p96
      $region30: #{conv_block_forward.2} parent=27 // pred_check_branch
        %529 = sbr.rel (%p527) target = $region32
      $region31: #{conv_block_forward.2} parent=27 // pred_region
        _
      $region32: #{conv_block_forward.2} parent=27 // pred_fallthru
        _
      // Predicated region
      $region33: #{conv_block_forward.2} parent=27 // pred_check
        %p530 = pneg %p124
      $region34: #{conv_block_forward.2} parent=27 // pred_check_branch
        %532 = sbr.rel (%p530) target = $region36
      $region35: #{conv_block_forward.2} parent=27 // pred_region
        _
      $region36: #{conv_block_forward.2} parent=27 // pred_fallthru
        _
    $region28: #{conv_block_forward.2} parent=5 // pred_fallthru
      _
    %p533 = scmp.le.s32.totalorder 2, %s10
    // Predicated region
    $region37: #{conv_block_forward.2} parent=5 // pred_check
      %p534 = pneg %p533
    $region38: #{conv_block_forward.2} parent=5 // pred_check_branch
      %536 = sbr.rel (%p534) target = $region40
    $region39: #{conv_block_forward.2} parent=5 // pred_region
      %s537 = ssub.s32 %s10, 2
      // Predicated region
      $region41: #{conv_block_forward.2} parent=39 // pred_check
        %p538 = pneg %p102
      $region42: #{conv_block_forward.2} parent=39 // pred_check_branch
        %540 = sbr.rel (%p538) target = $region44
      $region43: #{conv_block_forward.2} parent=39 // pred_region
        %p541 = scmp.lt.s32.totalorder %s21, 1
        %s542 = scalar_select %p541, %s21, 1
        %p543 = scmp.lt.s32.totalorder %s22, 3
        %s544 = scalar_select %p543, %s22, 3
        %s545 = smul.addr %s542, 4
        %s546 = sadd.s32 %s544, %s545
        %s547 = smul.addr %s546, 2
        %s548 = scalar_lea.vmem %s2, %s547
      $region44: #{conv_block_forward.2} parent=39 // pred_fallthru
        _
      // Predicated region
      $region45: #{conv_block_forward.2} parent=39 // pred_check
        %p549 = pneg %p130
      $region46: #{conv_block_forward.2} parent=39 // pred_check_branch
        %551 = sbr.rel (%p549) target = $region48
      $region47: #{conv_block_forward.2} parent=39 // pred_region
        %p552 = scmp.lt.s32.totalorder %s21, 1
        %s553 = scalar_select %p552, %s21, 1
        %p554 = scmp.lt.s32.totalorder %s22, 3
        %s555 = scalar_select %p554, %s22, 3
        %s556 = smul.addr %s553, 4
        %s557 = sadd.s32 %s555, %s556
        %s558 = smul.addr %s557, 2
        %s559 = scalar_lea.vmem %s3, %s558
      $region48: #{conv_block_forward.2} parent=39 // pred_fallthru
        _
    $region40: #{conv_block_forward.2} parent=5 // pred_fallthru
      _
  $region6: #{conv_block_forward.2} parent=0 // loop_footer
    %s14 = sadd.s32 1, %s10
  $region7: #{conv_block_forward.2} parent=0 // loop_footer_branch
    %9 = sbr.rel target = $region3
  $region8: #{conv_block_forward.2} parent=0 // loop_exit
    _

</llo_original>
